<compile_context>
chip_gen: v7x
topology: tpu7x:2x2x1
jax: 0.10.0
libtpu: 0.0.40
codegen_flags: <defaults>
</compile_context>

<pallas_src>
import functools

import jax
import jax.numpy as jnp
from jax.experimental import pallas as pl
from jax.experimental.pallas import tpu as pltpu

_SCALE = 1000.0
_INV_SCALE = 1.0 / _SCALE


def _depthnorm_kernel(scalars_ref, x_ref, o_ref, *, min_depth):
    """One row tile: scale, clip, normalize, replicate to 3 channels.

    scalars_ref: (2,) f32 SMEM -> [upper_clip, inv_norm]
    x_ref:       (tile_h, W) raw depth tile (any numeric dtype; cast in-kernel)
    o_ref:       (3, tile_h, W) f32 output tile
    """
    upper = scalars_ref[0]
    inv = scalars_ref[1]
    # Cast folded into the tile load: non-f32 raw depth never gets staged as a
    # full f32 copy in HBM by the wrapper.
    x = x_ref[...].astype(jnp.float32)
    y = jnp.minimum(jnp.maximum(x * _INV_SCALE, min_depth), upper) * inv
    # Three explicit per-channel stores (avoid building a 3x broadcast tile).
    o_ref[0, :, :] = y
    o_ref[1, :, :] = y
    o_ref[2, :, :] = y


def _row_align(itemsize):
    # Sub-32-bit dtypes pack along sublanes -> need taller row tiles.
    return max(8, 32 // max(1, int(itemsize)))


def _vmem_params():
    """Generation-aware (budget, vmem_limit) in bytes."""
    capacity = 64 << 20  # conservative fallback (v7x-sized)
    try:
        info = pltpu.get_tpu_info()
        capacity = int(getattr(info, "vmem_capacity_bytes", capacity))
    except Exception:
        pass
    # ~1/4 of physical VMEM for double-buffered blocks: 32 MiB on v5e/v6e,
    # 16 MiB on v7x.
    budget = min(max(capacity // 4, 8 << 20), 40 << 20)
    limit = min(budget * 2 + (8 << 20), (capacity * 3) // 4)
    return budget, limit


def _pick_tile_h(H, W, in_itemsize, budget_bytes):
    """Row-tile height: as large as the budget allows, but with >=2 grid steps
    (ideally 4) so the 'parallel' axis can megacore-shard on v7x."""
    align = _row_align(in_itemsize)

    # Double-buffered per-block footprint: input tile + (3, tile, W) f32 output.
    bytes_per_row = 2 * (in_itemsize + 3 * 4) * W
    budget_rows = max(1, budget_bytes // max(1, bytes_per_row))
    budget_rows = max(align, (budget_rows // align) * align)

    if H >= 4 * align:
        desired_steps = 4
    elif H >= 2 * align:
        desired_steps = 2
    else:
        desired_steps = 1
    if desired_steps > 1:
        cap_rows = max(align, (pl.cdiv(H, desired_steps) // align) * align)
    else:
        cap_rows = budget_rows

    tile_h = min(budget_rows, cap_rows)
    if tile_h >= H:
        tile_h = H  # full-dim block is always legal (single grid step)
    return tile_h


def depth_norm(image, max_depth=0, min_depth=0.01, vmem_budget_bytes=None):
    """Pallas DepthNorm.forward: image (H, W) -> (3, H, W) float32."""
    H, W = image.shape
    itemsize = jnp.dtype(image.dtype).itemsize

    if max_depth != 0:
        # Static normalizer: clip at max_depth, scale by 1/max_depth.
        scalars = jnp.array([max_depth, 1.0 / max_depth], dtype=jnp.float32)
    else:
        # Dynamic normalizer: global max of the scaled+clipped depth, computed
        # with a fused XLA reduction (cast + scale + clip fuse into the reduce,
        # only a scalar lands in HBM), so the Pallas kernel stays a single
        # read + single write pass and keeps its megacore-parallel grid.
        d = jnp.maximum(image.astype(jnp.float32) * _INV_SCALE, jnp.float32(min_depth))
        d_max = jnp.max(d)
        scalars = jnp.stack([d_max, 1.0 / d_max]).astype(jnp.float32)

    budget, vmem_limit = _vmem_params()
    if vmem_budget_bytes is not None:
        budget = int(vmem_budget_bytes)
        vmem_limit = max(vmem_limit, min(2 * budget + (8 << 20), 96 << 20))

    tile_h = _pick_tile_h(H, W, itemsize, budget)
    grid = (pl.cdiv(H, tile_h),)  # ragged last block is masked by Pallas

    kernel = functools.partial(_depthnorm_kernel, min_depth=float(min_depth))
    return pl.pallas_call(
        kernel,
        out_shape=jax.ShapeDtypeStruct((3, H, W), jnp.float32),
        grid=grid,
        in_specs=[
            pl.BlockSpec(memory_space=pltpu.MemorySpace.SMEM),   # (2,) scalars
            pl.BlockSpec((tile_h, W), lambda i: (i, 0)),          # raw depth rows
        ],
        out_specs=pl.BlockSpec((3, tile_h, W), lambda i: (0, i, 0)),
        compiler_params=pltpu.CompilerParams(
            dimension_semantics=("parallel",),   # megacore-shards rows on v7x
            vmem_limit_bytes=int(vmem_limit),
        ),
    )(scalars, image)


def _reference(image, max_depth=0, min_depth=0.01):
    d = image.astype(jnp.float32) / _SCALE
    d = jnp.maximum(d, min_depth)
    if max_depth != 0:
        d = jnp.minimum(d, max_depth) / max_depth
    else:
        d = d / jnp.max(d)
    return jnp.broadcast_to(d[None, :, :], (3,) + d.shape).astype(jnp.float32)


# TODO(synk): torch.from_numpy / host numpy round-trip in the reference is a pure
# framework conversion with no device compute; nothing to translate.

if __name__ == "__main__":
    key = jax.random.PRNGKey(0)
    k1, k2, k3, k4 = jax.random.split(key, 4)

    # 1) Small f32 depth map, default module config (max_depth=0 -> global max).
    img1 = jax.random.uniform(k1, (16, 16), jnp.float32, 0.0, 8000.0)
    out1 = jax.block_until_ready(depth_norm(img1, max_depth=0, min_depth=0.01))
    ref1 = _reference(img1, 0, 0.01)
    assert out1.shape == (3, 16, 16) and out1.dtype == jnp.float32
    assert jnp.allclose(out1, ref1, rtol=1e-5, atol=1e-6), "mismatch (global-max path)"

    # 2) max_depth != 0 branch.
    out2 = jax.block_until_ready(depth_norm(img1, max_depth=5.0, min_depth=0.01))
    ref2 = _reference(img1, 5.0, 0.01)
    assert jnp.allclose(out2, ref2, rtol=1e-5, atol=1e-6), "mismatch (max_depth path)"

    # 3) Raw integer depth (cast folded into the kernel) + multi-step parallel grid.
    img3 = jax.random.randint(k2, (64, 128), 0, 10000, dtype=jnp.int32)
    out3 = jax.block_until_ready(depth_norm(img3, max_depth=0, min_depth=0.01))
    ref3 = _reference(img3, 0, 0.01)
    assert out3.shape == (3, 64, 128)
    assert jnp.allclose(out3, ref3, rtol=1e-5, atol=1e-6), "mismatch (int32 input)"

    # 4) Non-multiple-of-128 width and a ragged last row block (H=20 -> tiles of 8).
    img4 = jax.random.uniform(k3, (20, 224), jnp.float32, 0.0, 8000.0)
    out4 = jax.block_until_ready(depth_norm(img4, max_depth=0, min_depth=0.01))
    ref4 = _reference(img4, 0, 0.01)
    assert out4.shape == (3, 20, 224)
    assert jnp.allclose(out4, ref4, rtol=1e-5, atol=1e-6), "mismatch (ragged/224 path)"

    # 5) Forced tiny VMEM budget -> exercises budget-limited small-tile tiling.
    img5 = jax.random.uniform(k4, (40, 128), jnp.float32, 0.0, 8000.0)
    out5 = jax.block_until_ready(
        depth_norm(img5, max_depth=0, min_depth=0.01, vmem_budget_bytes=64 * 1024)
    )
    ref5 = _reference(img5, 0, 0.01)
    assert jnp.allclose(out5, ref5, rtol=1e-5, atol=1e-6), "mismatch (small-budget path)"

    print("KERNEL_OK")
</pallas_src>

<mosaic_0001>
module attributes {stable_mosaic.version = 11 : i64} {
  func.func @_depthnorm_kernel(%arg0: i32, %arg1: memref<2xf32, #tpu.memory_space<smem>>, %arg2: memref<8x16xf32, #tpu.memory_space<vmem>>, %arg3: memref<3x8x16xf32, #tpu.memory_space<vmem>>) attributes {dimension_semantics = [#tpu.dimension_semantics<parallel>], iteration_bounds = array<i64: 2>, scalar_prefetch = 0 : i64, scratch_operands = 0 : i64, tpu.core_type = #tpu.core_type<tc>, window_params = [{transform_indices = @transform_0, window_bounds = array<i64: 2>}, {transform_indices = @transform_1, window_bounds = array<i64: 8, 16>}, {transform_indices = @transform_2, window_bounds = array<i64: 3, 8, 16>}]} {
    %c0 = arith.constant 0 : index
    %0 = memref.load %arg1[%c0] : memref<2xf32, #tpu.memory_space<smem>>
    %c1 = arith.constant 1 : index
    %1 = memref.load %arg1[%c1] : memref<2xf32, #tpu.memory_space<smem>>
    %c0_0 = arith.constant 0 : index
    %c0_1 = arith.constant 0 : index
    %2 = vector.load %arg2[%c0_0, %c0_1] : memref<8x16xf32, #tpu.memory_space<vmem>>, vector<8x16xf32>
    %cst = arith.constant 1.000000e-03 : f32
    %3 = vector.broadcast %cst : f32 to vector<8x16xf32>
    %4 = arith.mulf %2, %3 : vector<8x16xf32>
    %cst_2 = arith.constant 0.00999999977 : f32
    %5 = vector.broadcast %cst_2 : f32 to vector<8x16xf32>
    %6 = arith.maximumf %4, %5 : vector<8x16xf32>
    %7 = vector.broadcast %0 : f32 to vector<8x16xf32>
    %8 = arith.minimumf %6, %7 : vector<8x16xf32>
    %9 = vector.broadcast %1 : f32 to vector<8x16xf32>
    %10 = arith.mulf %8, %9 : vector<8x16xf32>
    %c0_3 = arith.constant 0 : index
    %c0_4 = arith.constant 0 : index
    %c0_5 = arith.constant 0 : index
    %11 = vector.load %arg3[%c0_3, %c0_4, %c0_5] : memref<3x8x16xf32, #tpu.memory_space<vmem>>, vector<1x8x16xf32>
    %12 = vector.shape_cast %11 : vector<1x8x16xf32> to vector<8x16xf32>
    %13 = vector.shape_cast %10 : vector<8x16xf32> to vector<1x8x16xf32>
    tpu.vector_store %arg3[%c0_3, %c0_4, %c0_5], %13 {strides = array<i32>} : memref<3x8x16xf32, #tpu.memory_space<vmem>>, vector<1x8x16xf32>,
    %c1_6 = arith.constant 1 : index
    %c0_7 = arith.constant 0 : index
    %c0_8 = arith.constant 0 : index
    %14 = vector.load %arg3[%c1_6, %c0_7, %c0_8] : memref<3x8x16xf32, #tpu.memory_space<vmem>>, vector<1x8x16xf32>
    %15 = vector.shape_cast %14 : vector<1x8x16xf32> to vector<8x16xf32>
    %16 = vector.shape_cast %10 : vector<8x16xf32> to vector<1x8x16xf32>
    tpu.vector_store %arg3[%c1_6, %c0_7, %c0_8], %16 {strides = array<i32>} : memref<3x8x16xf32, #tpu.memory_space<vmem>>, vector<1x8x16xf32>,
    %c2 = arith.constant 2 : index
    %c0_9 = arith.constant 0 : index
    %c0_10 = arith.constant 0 : index
    %17 = vector.load %arg3[%c2, %c0_9, %c0_10] : memref<3x8x16xf32, #tpu.memory_space<vmem>>, vector<1x8x16xf32>
    %18 = vector.shape_cast %17 : vector<1x8x16xf32> to vector<8x16xf32>
    %19 = vector.shape_cast %10 : vector<8x16xf32> to vector<1x8x16xf32>
    tpu.vector_store %arg3[%c2, %c0_9, %c0_10], %19 {strides = array<i32>} : memref<3x8x16xf32, #tpu.memory_space<vmem>>, vector<1x8x16xf32>,
    return
  }
  func.func @transform_0(%arg0: i32) -> i32 {
    %c0_i32 = arith.constant 0 : i32
    %c0_i32_0 = arith.constant 0 : i32
    return %c0_i32 : i32
  }
  func.func @transform_1(%arg0: i32) -> (i32, i32) {
    %c0_i32 = arith.constant 0 : i32
    %c0_i32_0 = arith.constant 0 : i32
    return %arg0, %c0_i32 : i32, i32
  }
  func.func @transform_2(%arg0: i32) -> (i32, i32, i32) {
    %c0_i32 = arith.constant 0 : i32
    %c0_i32_0 = arith.constant 0 : i32
    %c0_i32_1 = arith.constant 0 : i32
    return %c0_i32, %arg0, %c0_i32_0 : i32, i32, i32
  }
}

</mosaic_0001>

<llo_original>
// kernel: tpu_custom_call.1
$region0: #{tpu_custom_call.1}
  #allocation0 [shape = 'u32[]', space=smem, size = 0x4, offset = 0x4, fixed_abs, tag = 'smem constant byte address 0x4 - core index']
  #allocation1 [shape = 'u32[144,128]{1,0:T(1,128)}', space=vmem, size = 0x12000, scoped, tag = 'internal scratch']
  %s0 = inlined_call_operand.hbm [shape: f32[2], index: 0, kind: input, shape index: {}]
  %s1 = inlined_call_operand.hbm [shape: f32[16,16], index: 1, kind: input, shape index: {}]
  %s2 = inlined_call_operand.hbm [shape: f32[3,16,16], index: 2, kind: output, shape index: {}]
  %s3 = sld [smem:[#allocation0]]
  $region49: #{tpu_custom_call.1} parent=0
    _
  %s5 = ssub.s32 1, %s3
  %s6 = scalar_select 0, %s5, %s3
  $region1: #{tpu_custom_call.1} parent=0
    #allocation2 [shape = 'u8[512]{0}', space=smem, size = 0x200, scoped, tag = 'input window, operand 0, single buffered']
    #allocation3 [shape = 's32[2]{0}', space=sflag, size = 0x8, scoped, tag = 'scoped memory for tpu_custom_call.1']
    #allocation4 [shape = 's32[2]{0}', space=sflag, size = 0x8, scoped, tag = 'scoped memory for tpu_custom_call.1']
    #allocation5 [shape = 's32[2]{0}', space=sflag, size = 0x8, scoped, tag = 'scoped memory for tpu_custom_call.1']
    #allocation6 [shape = 'u8[8192]{0}', space=vmem, size = 0x2000, scoped, tag = 'input window, operand 1']
    #allocation7 [shape = 'u8[24576]{0}', space=vmem, size = 0x6000, scoped, tag = 'output window, operand 0']
    %7 = vsyncpa [#allocation5], 0
    %8 = vsyncpa [#allocation3], 0
    %s9 = scalar_lea.sflag [#allocation3], 1
    %10 = vsyncpa %s9, 0
    %11 = vsyncpa [#allocation4], 0
    %s12 = scalar_lea.sflag [#allocation4], 1
    %13 = vsyncpa %s12, 0
    loop: start=0, step=1, limit=4
    $region2: #{tpu_custom_call.1} parent=1 // loop_pre_header
      _
    $region3: #{tpu_custom_call.1} parent=1 // loop_header
      %s15 = sphi 0, %s19
      %p16 = scmp.ge.s32.totalorder %s15, 4
      %s23 = sphi 0, %s23
      %s25 = sphi 0, %s23
      %s26 = sphi 0, %s25
      %s40 = sphi 0, %s26
      %s46 = sphi 0, %s48
      %s49 = sphi 0, %s46
      %s50 = sphi 0, %s49
      %s66 = sphi 0, %s50
      %s72 = sphi 0, %s74
      %s75 = sphi 0, %s72
      %s76 = sphi 0, %s75
      %s92 = sphi 0, %s76
    $region4: #{tpu_custom_call.1} parent=1 // loop_header_branch
      %18 = sbr.rel (%p16) target = $region8
    $region5: #{tpu_custom_call.1} parent=1 // loop_body
      %s20 = ssub.s32 %s15, 1
      %s21 = ssub.s32 %s15, 2
      %s22 = sadd.s32 %s15, 1
      %s24 = sadd.s32 %s23, 1
      %p27 = scmp.eq.s32.totalorder %s15, 1
      %p28 = scmp.ne.s32.totalorder %s23, %s25
      %p29 = scmp.eq.s32.totalorder %s15, 0
      %p30 = por %p28, %p29
      %p31 = scmp.ne.s32.totalorder %s23, %s25
      %p32 = scmp.eq.s32.totalorder %s20, 1
      %p33 = por %p31, %p32
      %p34 = scmp.ne.s32.totalorder %s25, %s26
      %p35 = scmp.eq.s32.totalorder %s20, 0
      %p36 = por %p34, %p35
      %p37 = scmp.ne.s32.totalorder %s25, %s26
      %p38 = scmp.eq.s32.totalorder %s21, 1
      %p39 = por %p37, %p38
      %p41 = scmp.ne.s32.totalorder %s26, %s40
      %p42 = scmp.eq.s32.totalorder %s21, 0
      %p43 = por %p41, %p42
      %s44 = ssub.s32 %s15, %s22
      %p45 = scmp.eq.s32.totalorder %s44, 0
      %s47 = sadd.s32 %s46, 1
      %s48 = scalar_select %p45, %s46, %s47
      %p51 = pneg %p45
      %p52 = scmp.eq.s32.totalorder %s15, 1
      %p53 = por %p51, %p52
      %p54 = scmp.ne.s32.totalorder %s46, %s49
      %p55 = scmp.eq.s32.totalorder %s15, 0
      %p56 = por %p54, %p55
      %p57 = scmp.ne.s32.totalorder %s46, %s49
      %p58 = scmp.eq.s32.totalorder %s20, 1
      %p59 = por %p57, %p58
      %p60 = scmp.ne.s32.totalorder %s49, %s50
      %p61 = scmp.eq.s32.totalorder %s20, 0
      %p62 = por %p60, %p61
      %p63 = scmp.ne.s32.totalorder %s49, %s50
      %p64 = scmp.eq.s32.totalorder %s21, 1
      %p65 = por %p63, %p64
      %p67 = scmp.ne.s32.totalorder %s50, %s66
      %p68 = scmp.eq.s32.totalorder %s21, 0
      %p69 = por %p67, %p68
      %s70 = ssub.s32 %s15, %s22
      %p71 = scmp.eq.s32.totalorder %s70, 0
      %s73 = sadd.s32 %s72, 1
      %s74 = scalar_select %p71, %s72, %s73
      %p77 = pneg %p71
      %p78 = scmp.eq.s32.totalorder %s15, 1
      %p79 = por %p77, %p78
      %p80 = scmp.ne.s32.totalorder %s72, %s75
      %p81 = scmp.eq.s32.totalorder %s15, 0
      %p82 = por %p80, %p81
      %p83 = scmp.ne.s32.totalorder %s72, %s75
      %p84 = scmp.eq.s32.totalorder %s20, 1
      %p85 = por %p83, %p84
      %p86 = scmp.ne.s32.totalorder %s75, %s76
      %p87 = scmp.eq.s32.totalorder %s20, 0
      %p88 = por %p86, %p87
      %p89 = scmp.ne.s32.totalorder %s75, %s76
      %p90 = scmp.eq.s32.totalorder %s21, 1
      %p91 = por %p89, %p90
      %p93 = scmp.ne.s32.totalorder %s76, %s92
      %p94 = scmp.eq.s32.totalorder %s21, 0
      %p95 = por %p93, %p94
      %p96 = scmp.le.s32.totalorder 1, %s15
      %p97 = scmp.lt.s32.totalorder %s15, 3
      %p98 = pnand %p96, %p97
      %p99 = pneg %p98
      // Predicated region
      $region9: #{tpu_custom_call.1} parent=5 // pred_check
        _
      $region10: #{tpu_custom_call.1} parent=5 // pred_check_branch
        %101 = sbr.rel (%p98) target = $region12
      $region11: #{tpu_custom_call.1} parent=5 // pred_region
        %s102 = ssub.s32 %s15, 1
        // Predicated region
        $region13: #{tpu_custom_call.1} parent=11 // pred_check
          %p103 = pneg %p36
        $region14: #{tpu_custom_call.1} parent=11 // pred_check_branch
          %105 = sbr.rel (%p103) target = $region16
        $region15: #{tpu_custom_call.1} parent=11 // pred_region
          %s107 = ssub.s32 16, 16
          %108 = vsyncadd [#allocation5], %s107
          %111 = dma.hbm_to_smem %s0, 16, [#allocation2], [#allocation5]
        $region16: #{tpu_custom_call.1} parent=11 // pred_fallthru
          _
      $region12: #{tpu_custom_call.1} parent=5 // pred_fallthru
        _
      %p112 = scmp.lt.s32.totalorder %s15, 2
      // Predicated region
      $region17: #{tpu_custom_call.1} parent=5 // pred_check
        %p113 = pneg %p112
      $region18: #{tpu_custom_call.1} parent=5 // pred_check_branch
        %115 = sbr.rel (%p113) target = $region20
      $region19: #{tpu_custom_call.1} parent=5 // pred_region
        // Predicated region
        $region21: #{tpu_custom_call.1} parent=19 // pred_check
          %p116 = pneg %p56
        $region22: #{tpu_custom_call.1} parent=19 // pred_check_branch
          %118 = sbr.rel (%p116) target = $region24
        $region23: #{tpu_custom_call.1} parent=19 // pred_region
          %s119 = sand.u32 %s46, 1
          %s120 = scalar_lea.sflag [#allocation3], %s119
          %s121 = sand.u32 %s46, 1
          %s122 = smul.addr %s121, 8
          %s123 = scalar_lea.vmem [#allocation6], %s122
          %s125 = ssub.s32 128, 128
          %126 = vsyncadd %s120, %s125
          %s127 = smul.addr %s15, 128
          %s128 = scalar_lea.hbm %s1, %s127
          %s130 = sshll.u32 %s123, 4
          %s131 = int_to_ptr.vmem [resolvable:$true] %s130
          %133 = dma.hbm_to_vmem [thread:$0]  %s128, 128, %s131, %s120
        $region24: #{tpu_custom_call.1} parent=19 // pred_fallthru
          _
      $region20: #{tpu_custom_call.1} parent=5 // pred_fallthru
        _
      %p134 = scmp.le.s32.totalorder 1, %s15
      %p135 = scmp.lt.s32.totalorder %s15, 3
      %p136 = pnand %p134, %p135
      %p137 = pneg %p136
      // Predicated region
      $region25: #{tpu_custom_call.1} parent=5 // pred_check
        _
      $region26: #{tpu_custom_call.1} parent=5 // pred_check_branch
        %139 = sbr.rel (%p136) target = $region28
      $region27: #{tpu_custom_call.1} parent=5 // pred_region
        %s140 = ssub.s32 %s15, 1
        // Predicated region
        $region29: #{tpu_custom_call.1} parent=27 // pred_check
          %p141 = pneg %p36
        $region30: #{tpu_custom_call.1} parent=27 // pred_check_branch
          %143 = sbr.rel (%p141) target = $region32
        $region31: #{tpu_custom_call.1} parent=27 // pred_region
          %144 = dma.done [#allocation5], 16
        $region32: #{tpu_custom_call.1} parent=27 // pred_fallthru
          _
        %s145 = sand.u32 %s49, 1
        %s146 = scalar_lea.sflag [#allocation3], %s145
        %s147 = sand.u32 %s49, 1
        %s148 = smul.addr %s147, 8
        %s149 = scalar_lea.vmem [#allocation6], %s148
        // Predicated region
        $region33: #{tpu_custom_call.1} parent=27 // pred_check
          %p150 = pneg %p62
        $region34: #{tpu_custom_call.1} parent=27 // pred_check_branch
          %152 = sbr.rel (%p150) target = $region36
        $region35: #{tpu_custom_call.1} parent=27 // pred_region
          %153 = dma.done %s146, 128
        $region36: #{tpu_custom_call.1} parent=27 // pred_fallthru
          _
        %154 = sfence
        %p155 = pneg %p36
        %p156 = pneg %p33
        %s157 = sand.u32 %s49, 1
        %s158 = scalar_lea.sflag [#allocation3], %s157
        %s159 = sand.u32 %s49, 1
        %s160 = smul.addr %s159, 8
        %s161 = scalar_lea.vmem [#allocation6], %s160
        %p162 = pneg %p62
        %p163 = pneg %p59
        %p164 = pneg %p88
        %p165 = pneg %p85
        %s166 = sand.u32 %s75, 1
        %s167 = scalar_lea.sflag [#allocation4], %s166
        %s168 = sand.u32 %s75, 1
        %s169 = smul.addr %s168, 24
        %s170 = scalar_lea.vmem [#allocation7], %s169
        %s171 = sld [smem:[#allocation2]]
        %s172 = sld [smem:[#allocation2 + $0x1]]
        %v173 = vld [vmem:[%s149] sm:$0xff]
        %v174 = vmul.f32 %v173, 0.001
        %v175 = vmax.f32 %v174, 0.01
        %v176 = vstv %s171
        %v177 = vmin.f32 %v175, %v176
        %v178 = vstv %s172
        %v179 = vmul.f32 %v177, %v178
        %vm180 = vcmask 130048
        %181 = vst.msk [vmem:[%s170] sm:$0xff] %vm180, %v179
        %s182 = scalar_lea.vmem %s170, 8 [#allocation7]
        %183 = vst.msk [vmem:[%s182] sm:$0xff] %vm180, %v179
        %s184 = scalar_lea.vmem %s170, 16 [#allocation7]
        %185 = vst.msk [vmem:[%s184] sm:$0xff] %vm180, %v179
        %s186 = sand.u32 %s75, 1
        %s187 = scalar_lea.sflag [#allocation4], %s186
        %s188 = sand.u32 %s75, 1
        %s189 = smul.addr %s188, 24
        %s190 = scalar_lea.vmem [#allocation7], %s189
        // Predicated region
        $region37: #{tpu_custom_call.1} parent=27 // pred_check
          %p191 = pneg %p85
        $region38: #{tpu_custom_call.1} parent=27 // pred_check_branch
          %193 = sbr.rel (%p191) target = $region40
        $region39: #{tpu_custom_call.1} parent=27 // pred_region
          %s195 = ssub.s32 384, 384
          %196 = vsyncadd %s187, %s195
          %s197 = smul.addr %s20, 128
          %s198 = scalar_lea.hbm %s2, %s197
          %s199 = sshll.u32 %s190, 4
          %s200 = int_to_ptr.vmem [resolvable:$true] %s199
          %205 = dma.vmem_to_hbm [thread:$0]  %s200, 384, %s198, %s187, 128, 256, 8
        $region40: #{tpu_custom_call.1} parent=27 // pred_fallthru
          _
      $region28: #{tpu_custom_call.1} parent=5 // pred_fallthru
        _
      %p206 = scmp.le.s32.totalorder 2, %s15
      // Predicated region
      $region41: #{tpu_custom_call.1} parent=5 // pred_check
        %p207 = pneg %p206
      $region42: #{tpu_custom_call.1} parent=5 // pred_check_branch
        %209 = sbr.rel (%p207) target = $region44
      $region43: #{tpu_custom_call.1} parent=5 // pred_region
        %s210 = ssub.s32 %s15, 2
        // Predicated region
        $region45: #{tpu_custom_call.1} parent=43 // pred_check
          %p211 = pneg %p91
        $region46: #{tpu_custom_call.1} parent=43 // pred_check_branch
          %213 = sbr.rel (%p211) target = $region48
        $region47: #{tpu_custom_call.1} parent=43 // pred_region
          %s214 = sand.u32 %s76, 1
          %s215 = scalar_lea.sflag [#allocation4], %s214
          %s216 = sand.u32 %s76, 1
          %s217 = smul.addr %s216, 24
          %s218 = scalar_lea.vmem [#allocation7], %s217
          %219 = dma.done %s215, 384
        $region48: #{tpu_custom_call.1} parent=43 // pred_fallthru
          _
      $region44: #{tpu_custom_call.1} parent=5 // pred_fallthru
        _
    $region6: #{tpu_custom_call.1} parent=1 // loop_footer
      %s19 = sadd.s32 1, %s15
    $region7: #{tpu_custom_call.1} parent=1 // loop_footer_branch
      %14 = sbr.rel target = $region3
    $region8: #{tpu_custom_call.1} parent=1 // loop_exit
      _
    %220 = vsyncpa [#allocation3], 1
    %s221 = scalar_lea.sflag [#allocation3], 1
    %222 = vsyncpa %s221, 1
    %223 = vsyncpa [#allocation4], 1
    %s224 = scalar_lea.sflag [#allocation4], 1
    %225 = vsyncpa %s224, 1
    %226 = vsyncpa [#allocation5], 1
    %s227 = scalar_lea.sflag [#allocation5], 1
    %228 = vsyncpa %s227, 1

</llo_original>
